<compile_context>
chip_gen: v6e
topology: v6e:2x2x1
jax: 0.10.0
libtpu: 0.0.40
codegen_flags: <defaults>
</compile_context>

<pallas_src>
import jax
import jax.numpy as jnp
from jax.experimental import pallas as pl
from jax.experimental.pallas import tpu as pltpu


def rb_kernel(x_ref, w1_ref, b1_ref, w2_ref, b2_ref,
              wd1_ref, bd1_ref, wd2_ref, bd2_ref, o_ref):
    # x_ref block: (B_TILE, C, HW) -- B_TILE images in NC(HW) layout.
    bt, C, HW = x_ref.shape

    w1 = w1_ref[...]          # (C, C)   conv1 weight, (out, in)
    w2 = w2_ref[...]          # (C, C)   conv2 weight
    wd1 = wd1_ref[...]        # (Cr, C)  attention squeeze
    wd2 = wd2_ref[...]        # (C, Cr)  attention excite
    bd1 = bd1_ref[...]        # (Cr, 1)
    bd2 = bd2_ref[...]        # (C, 1)

    # Hoist the per-channel bias broadcasts out of the image loop
    # (JAX does not CSE broadcast_in_dim).
    b1 = jnp.broadcast_to(b1_ref[...], (C, HW))
    b2 = jnp.broadcast_to(b2_ref[...], (C, HW))

    for i in range(bt):                               # static, unrolled
        x = x_ref[i]                                  # (C, HW), HW on lanes

        # conv1 (1x1) + ReLU : (C, C) @ (C, HW)
        h1 = jnp.dot(w1, x, preferred_element_type=jnp.float32) + b1
        h1 = jnp.maximum(h1, 0.0)

        # conv2 (1x1)
        h2 = jnp.dot(w2, h1, preferred_element_type=jnp.float32) + b2

        # CALayer: global average pool over HW (lane reduce) -> (C, 1)
        pooled = jnp.mean(h2, axis=1, keepdims=True)

        # conv_du: C -> C//r (ReLU), C//r -> C (Sigmoid); tiny matmuls.
        a = jnp.dot(wd1, pooled, preferred_element_type=jnp.float32) + bd1
        a = jnp.maximum(a, 0.0)
        s = jax.nn.sigmoid(
            jnp.dot(wd2, a, preferred_element_type=jnp.float32) + bd2)

        # channel-wise scale + residual; lane-dense (C, HW) store.
        o_ref[i] = (h2 * s + x).astype(o_ref.dtype)


def _pick_batch_tile(N, C, HW, itemsize=4, budget_bytes=4 * 1024 * 1024):
    """Largest divisor of N whose block keeps double-buffered in/out blocks
    plus the f32 intermediates comfortably inside scoped VMEM on all chips."""
    # ~2x double-buffered input + 2x output + ~2 f32 (C, HW) temps per image.
    per_image = C * HW * itemsize * 6
    bt = max(1, min(N, budget_bytes // max(per_image, 1)))
    while N % bt:
        bt -= 1
    return bt


def rb_forward(x_nchw, params, *, batch_tile=None):
    """x_nchw: (N, C, H, W) float32. params: conv-layout weights (see make_params)."""
    N, C, H, W = x_nchw.shape
    HW = H * W
    Cr = params["wd1"].shape[0]

    # Free reshape (no transpose, no HBM data movement): NCHW -> (N, C, HW).
    x = x_nchw.reshape(N, C, HW)

    bt = batch_tile if batch_tile is not None else _pick_batch_tile(N, C, HW)
    assert N % bt == 0

    # NOTE: for very large HW a two-pass HW-tiled variant (pool accumulated in
    # scratch across an 'arbitrary' HW axis) would be needed; full-HW blocks
    # are used here since the batch tile already bounds the VMEM working set.

    cost = pl.CostEstimate(
        flops=4 * N * HW * C * C + 4 * N * HW * C,
        transcendentals=N * C,
        bytes_accessed=(2 * N * C * HW + 2 * C * C + 2 * C * Cr + 3 * C + Cr) * 4,
    )

    out = pl.pallas_call(
        rb_kernel,
        out_shape=jax.ShapeDtypeStruct((N, C, HW), x.dtype),
        grid_spec=pltpu.PrefetchScalarGridSpec(
            num_scalar_prefetch=0,
            grid=(N // bt,),
            in_specs=[
                pl.BlockSpec((bt, C, HW), lambda n: (n, 0, 0)),  # x
                pl.BlockSpec((C, C),  lambda n: (0, 0)),         # w1
                pl.BlockSpec((C, 1),  lambda n: (0, 0)),         # b1
                pl.BlockSpec((C, C),  lambda n: (0, 0)),         # w2
                pl.BlockSpec((C, 1),  lambda n: (0, 0)),         # b2
                pl.BlockSpec((Cr, C), lambda n: (0, 0)),         # wd1
                pl.BlockSpec((Cr, 1), lambda n: (0, 0)),         # bd1
                pl.BlockSpec((C, Cr), lambda n: (0, 0)),         # wd2
                pl.BlockSpec((C, 1),  lambda n: (0, 0)),         # bd2
            ],
            out_specs=pl.BlockSpec((bt, C, HW), lambda n: (n, 0, 0)),
        ),
        compiler_params=pltpu.CompilerParams(
            dimension_semantics=("parallel",)),
        cost_estimate=cost,
    )(x, params["w1"], params["b1"], params["w2"], params["b2"],
      params["wd1"], params["bd1"], params["wd2"], params["bd2"])

    # Free reshape back to NCHW.
    return out.reshape(N, C, H, W)


def make_params(key, filters, reduction=16):
    """Deterministic synthetic params in PyTorch conv layout.

    1x1 conv weight (out, in, 1, 1) is stored as (out, in); bias as (out, 1)
    so it broadcasts along the HW (lane) axis inside the kernel.
    """
    cr = max(filters // reduction, 1)
    ks = jax.random.split(key, 8)

    def conv1x1(kw, kb, cin, cout):
        bound = 1.0 / jnp.sqrt(cin)          # fan_in = cin * 1 * 1
        w = jax.random.uniform(kw, (cout, cin), jnp.float32, -bound, bound)
        b = jax.random.uniform(kb, (cout, 1), jnp.float32, -bound, bound)
        return w, b

    w1, b1 = conv1x1(ks[0], ks[1], filters, filters)
    w2, b2 = conv1x1(ks[2], ks[3], filters, filters)
    wd1, bd1 = conv1x1(ks[4], ks[5], filters, cr)
    wd2, bd2 = conv1x1(ks[6], ks[7], cr, filters)
    return dict(w1=w1, b1=b1, w2=w2, b2=b2,
                wd1=wd1, bd1=bd1, wd2=wd2, bd2=bd2)


def rb_reference(x_nchw, p):
    """Pure-JAX reference matching the PyTorch forward (NCHW)."""
    N, C, H, W = x_nchw.shape
    x = x_nchw.reshape(N, C, H * W)
    h1 = jnp.maximum(jnp.einsum("oc,nch->noh", p["w1"], x) + p["b1"][None], 0.0)
    h2 = jnp.einsum("oc,nch->noh", p["w2"], h1) + p["b2"][None]
    pooled = jnp.mean(h2, axis=2, keepdims=True)
    a = jnp.maximum(jnp.einsum("rc,ncx->nrx", p["wd1"], pooled) + p["bd1"][None], 0.0)
    s = jax.nn.sigmoid(jnp.einsum("cr,nrx->ncx", p["wd2"], a) + p["bd2"][None])
    return (h2 * s + x).reshape(N, C, H, W)


if __name__ == "__main__":
    filters = 32            # reduction=16 -> squeeze width 2, as in PyTorch
    N, H, W = 2, 16, 16     # HW = 256 -> lane-dense (>=128) output stores

    key = jax.random.PRNGKey(0)
    kx, kp = jax.random.split(key)
    x = jax.random.normal(kx, (N, filters, H, W), jnp.float32)
    params = make_params(kp, filters)

    out = rb_forward(x, params)
    jax.block_until_ready(out)

    ref = rb_reference(x, params)
    assert out.shape == x.shape
    assert jnp.allclose(out, ref, atol=1e-4, rtol=1e-4), float(
        jnp.max(jnp.abs(out - ref)))
    print("KERNEL_OK")
</pallas_src>

<mosaic_0001>
module attributes {stable_mosaic.version = 11 : i64} {
  func.func @rb_kernel(%arg0: i32, %arg1: memref<2x32x256xf32, #tpu.memory_space<vmem>>, %arg2: memref<32x32xf32, #tpu.memory_space<vmem>>, %arg3: memref<32x1xf32, #tpu.memory_space<vmem>>, %arg4: memref<32x32xf32, #tpu.memory_space<vmem>>, %arg5: memref<32x1xf32, #tpu.memory_space<vmem>>, %arg6: memref<2x32xf32, #tpu.memory_space<vmem>>, %arg7: memref<2x1xf32, #tpu.memory_space<vmem>>, %arg8: memref<32x2xf32, #tpu.memory_space<vmem>>, %arg9: memref<32x1xf32, #tpu.memory_space<vmem>>, %arg10: memref<2x32x256xf32, #tpu.memory_space<vmem>>) attributes {dimension_semantics = [#tpu.dimension_semantics<parallel>], iteration_bounds = array<i64: 1>, scalar_prefetch = 0 : i64, scratch_operands = 0 : i64, tpu.core_type = #tpu.core_type<tc>, window_params = [{transform_indices = @transform_0, window_bounds = array<i64: 2, 32, 256>}, {pipeline_mode = #tpu.pipeline_mode<synchronous>, transform_indices = @transform_1, window_bounds = array<i64: 32, 32>}, {pipeline_mode = #tpu.pipeline_mode<synchronous>, transform_indices = @transform_2, window_bounds = array<i64: 32, 1>}, {pipeline_mode = #tpu.pipeline_mode<synchronous>, transform_indices = @transform_3, window_bounds = array<i64: 32, 32>}, {pipeline_mode = #tpu.pipeline_mode<synchronous>, transform_indices = @transform_4, window_bounds = array<i64: 32, 1>}, {pipeline_mode = #tpu.pipeline_mode<synchronous>, transform_indices = @transform_5, window_bounds = array<i64: 2, 32>}, {pipeline_mode = #tpu.pipeline_mode<synchronous>, transform_indices = @transform_6, window_bounds = array<i64: 2, 1>}, {pipeline_mode = #tpu.pipeline_mode<synchronous>, transform_indices = @transform_7, window_bounds = array<i64: 32, 2>}, {pipeline_mode = #tpu.pipeline_mode<synchronous>, transform_indices = @transform_8, window_bounds = array<i64: 32, 1>}, {transform_indices = @transform_9, window_bounds = array<i64: 2, 32, 256>}]} {
    %c0 = arith.constant 0 : index
    %c0_0 = arith.constant 0 : index
    %0 = vector.load %arg2[%c0, %c0_0] : memref<32x32xf32, #tpu.memory_space<vmem>>, vector<32x32xf32>
    %c0_1 = arith.constant 0 : index
    %c0_2 = arith.constant 0 : index
    %1 = vector.load %arg4[%c0_1, %c0_2] : memref<32x32xf32, #tpu.memory_space<vmem>>, vector<32x32xf32>
    %c0_3 = arith.constant 0 : index
    %c0_4 = arith.constant 0 : index
    %2 = vector.load %arg6[%c0_3, %c0_4] : memref<2x32xf32, #tpu.memory_space<vmem>>, vector<2x32xf32>
    %c0_5 = arith.constant 0 : index
    %c0_6 = arith.constant 0 : index
    %3 = vector.load %arg8[%c0_5, %c0_6] : memref<32x2xf32, #tpu.memory_space<vmem>>, vector<32x2xf32>
    %c0_7 = arith.constant 0 : index
    %c0_8 = arith.constant 0 : index
    %4 = vector.load %arg7[%c0_7, %c0_8] : memref<2x1xf32, #tpu.memory_space<vmem>>, vector<2x1xf32>
    %c0_9 = arith.constant 0 : index
    %c0_10 = arith.constant 0 : index
    %5 = vector.load %arg9[%c0_9, %c0_10] : memref<32x1xf32, #tpu.memory_space<vmem>>, vector<32x1xf32>
    %c0_11 = arith.constant 0 : index
    %c0_12 = arith.constant 0 : index
    %6 = vector.load %arg3[%c0_11, %c0_12] : memref<32x1xf32, #tpu.memory_space<vmem>>, vector<32x1xf32>
    %7 = vector.shape_cast %6 : vector<32x1xf32> to vector<32x1xf32>
    %8 = vector.broadcast %7 : vector<32x1xf32> to vector<32x256xf32>
    %c0_13 = arith.constant 0 : index
    %c0_14 = arith.constant 0 : index
    %9 = vector.load %arg5[%c0_13, %c0_14] : memref<32x1xf32, #tpu.memory_space<vmem>>, vector<32x1xf32>
    %10 = vector.shape_cast %9 : vector<32x1xf32> to vector<32x1xf32>
    %11 = vector.broadcast %10 : vector<32x1xf32> to vector<32x256xf32>
    %c0_15 = arith.constant 0 : index
    %c0_16 = arith.constant 0 : index
    %c0_17 = arith.constant 0 : index
    %12 = vector.load %arg1[%c0_15, %c0_16, %c0_17] : memref<2x32x256xf32, #tpu.memory_space<vmem>>, vector<1x32x256xf32>
    %13 = vector.shape_cast %12 : vector<1x32x256xf32> to vector<32x256xf32>
    %cst = arith.constant dense<0.000000e+00> : vector<32x256xf32>
    %14 = tpu.matmul %0, %13, %cst {dimension_numbers = #tpu.dot_dimension_numbers<[1], [0], [0], [1], [0, 0, 1, 1], [], []>} : vector<32x32xf32>, vector<32x256xf32>, vector<32x256xf32> -> vector<32x256xf32>
    %15 = arith.addf %14, %8 : vector<32x256xf32>
    %cst_18 = arith.constant 0.000000e+00 : f32
    %16 = vector.broadcast %cst_18 : f32 to vector<32x256xf32>
    %17 = arith.maximumf %15, %16 : vector<32x256xf32>
    %cst_19 = arith.constant dense<0.000000e+00> : vector<32x256xf32>
    %18 = tpu.matmul %1, %17, %cst_19 {dimension_numbers = #tpu.dot_dimension_numbers<[1], [0], [0], [1], [0, 0, 1, 1], [], []>} : vector<32x32xf32>, vector<32x256xf32>, vector<32x256xf32> -> vector<32x256xf32>
    %19 = arith.addf %18, %11 : vector<32x256xf32>
    %cst_20 = arith.constant dense<0.000000e+00> : vector<32xf32>
    %20 = vector.multi_reduction <add>, %19, %cst_20 [1] : vector<32x256xf32> to vector<32xf32>
    %21 = vector.shape_cast %20 : vector<32xf32> to vector<32x1xf32>
    %cst_21 = arith.constant 2.560000e+02 : f32
    %22 = vector.broadcast %cst_21 : f32 to vector<32x1xf32>
    %23 = arith.divf %21, %22 : vector<32x1xf32>
    %cst_22 = arith.constant dense<0.000000e+00> : vector<2x1xf32>
    %24 = tpu.matmul %2, %23, %cst_22 {dimension_numbers = #tpu.dot_dimension_numbers<[1], [0], [0], [1], [0, 0, 1, 1], [], []>} : vector<2x32xf32>, vector<32x1xf32>, vector<2x1xf32> -> vector<2x1xf32>
    %25 = arith.addf %24, %4 : vector<2x1xf32>
    %cst_23 = arith.constant 0.000000e+00 : f32
    %26 = vector.broadcast %cst_23 : f32 to vector<2x1xf32>
    %27 = arith.maximumf %25, %26 : vector<2x1xf32>
    %cst_24 = arith.constant dense<0.000000e+00> : vector<32x1xf32>
    %28 = tpu.matmul %3, %27, %cst_24 {dimension_numbers = #tpu.dot_dimension_numbers<[1], [0], [0], [1], [0, 0, 1, 1], [], []>} : vector<32x2xf32>, vector<2x1xf32>, vector<32x1xf32> -> vector<32x1xf32>
    %29 = arith.addf %28, %5 : vector<32x1xf32>
    %30 = arith.negf %29 : vector<32x1xf32>
    %31 = math.exp %30 : vector<32x1xf32>
    %cst_25 = arith.constant 1.000000e+00 : f32
    %32 = vector.broadcast %cst_25 : f32 to vector<32x1xf32>
    %33 = arith.addf %32, %31 : vector<32x1xf32>
    %34 = arith.divf %32, %33 : vector<32x1xf32>
    %35 = vector.broadcast %34 : vector<32x1xf32> to vector<32x256xf32>
    %36 = arith.mulf %19, %35 : vector<32x256xf32>
    %37 = arith.addf %36, %13 : vector<32x256xf32>
    %c0_26 = arith.constant 0 : index
    %c0_27 = arith.constant 0 : index
    %c0_28 = arith.constant 0 : index
    %38 = vector.load %arg10[%c0_26, %c0_27, %c0_28] : memref<2x32x256xf32, #tpu.memory_space<vmem>>, vector<1x32x256xf32>
    %39 = vector.shape_cast %38 : vector<1x32x256xf32> to vector<32x256xf32>
    %40 = vector.shape_cast %37 : vector<32x256xf32> to vector<1x32x256xf32>
    tpu.vector_store %arg10[%c0_26, %c0_27, %c0_28], %40 {strides = array<i32>} : memref<2x32x256xf32, #tpu.memory_space<vmem>>, vector<1x32x256xf32>,
    %c1 = arith.constant 1 : index
    %c0_29 = arith.constant 0 : index
    %c0_30 = arith.constant 0 : index
    %41 = vector.load %arg1[%c1, %c0_29, %c0_30] : memref<2x32x256xf32, #tpu.memory_space<vmem>>, vector<1x32x256xf32>
    %42 = vector.shape_cast %41 : vector<1x32x256xf32> to vector<32x256xf32>
    %cst_31 = arith.constant dense<0.000000e+00> : vector<32x256xf32>
    %43 = tpu.matmul %0, %42, %cst_31 {dimension_numbers = #tpu.dot_dimension_numbers<[1], [0], [0], [1], [0, 0, 1, 1], [], []>} : vector<32x32xf32>, vector<32x256xf32>, vector<32x256xf32> -> vector<32x256xf32>
    %44 = arith.addf %43, %8 : vector<32x256xf32>
    %cst_32 = arith.constant 0.000000e+00 : f32
    %45 = vector.broadcast %cst_32 : f32 to vector<32x256xf32>
    %46 = arith.maximumf %44, %45 : vector<32x256xf32>
    %cst_33 = arith.constant dense<0.000000e+00> : vector<32x256xf32>
    %47 = tpu.matmul %1, %46, %cst_33 {dimension_numbers = #tpu.dot_dimension_numbers<[1], [0], [0], [1], [0, 0, 1, 1], [], []>} : vector<32x32xf32>, vector<32x256xf32>, vector<32x256xf32> -> vector<32x256xf32>
    %48 = arith.addf %47, %11 : vector<32x256xf32>
    %cst_34 = arith.constant dense<0.000000e+00> : vector<32xf32>
    %49 = vector.multi_reduction <add>, %48, %cst_34 [1] : vector<32x256xf32> to vector<32xf32>
    %50 = vector.shape_cast %49 : vector<32xf32> to vector<32x1xf32>
    %cst_35 = arith.constant 2.560000e+02 : f32
    %51 = vector.broadcast %cst_35 : f32 to vector<32x1xf32>
    %52 = arith.divf %50, %51 : vector<32x1xf32>
    %cst_36 = arith.constant dense<0.000000e+00> : vector<2x1xf32>
    %53 = tpu.matmul %2, %52, %cst_36 {dimension_numbers = #tpu.dot_dimension_numbers<[1], [0], [0], [1], [0, 0, 1, 1], [], []>} : vector<2x32xf32>, vector<32x1xf32>, vector<2x1xf32> -> vector<2x1xf32>
    %54 = arith.addf %53, %4 : vector<2x1xf32>
    %cst_37 = arith.constant 0.000000e+00 : f32
    %55 = vector.broadcast %cst_37 : f32 to vector<2x1xf32>
    %56 = arith.maximumf %54, %55 : vector<2x1xf32>
    %cst_38 = arith.constant dense<0.000000e+00> : vector<32x1xf32>
    %57 = tpu.matmul %3, %56, %cst_38 {dimension_numbers = #tpu.dot_dimension_numbers<[1], [0], [0], [1], [0, 0, 1, 1], [], []>} : vector<32x2xf32>, vector<2x1xf32>, vector<32x1xf32> -> vector<32x1xf32>
    %58 = arith.addf %57, %5 : vector<32x1xf32>
    %59 = arith.negf %58 : vector<32x1xf32>
    %60 = math.exp %59 : vector<32x1xf32>
    %cst_39 = arith.constant 1.000000e+00 : f32
    %61 = vector.broadcast %cst_39 : f32 to vector<32x1xf32>
    %62 = arith.addf %61, %60 : vector<32x1xf32>
    %63 = arith.divf %61, %62 : vector<32x1xf32>
    %64 = vector.broadcast %63 : vector<32x1xf32> to vector<32x256xf32>
    %65 = arith.mulf %48, %64 : vector<32x256xf32>
    %66 = arith.addf %65, %42 : vector<32x256xf32>
    %c1_40 = arith.constant 1 : index
    %c0_41 = arith.constant 0 : index
    %c0_42 = arith.constant 0 : index
    %67 = vector.load %arg10[%c1_40, %c0_41, %c0_42] : memref<2x32x256xf32, #tpu.memory_space<vmem>>, vector<1x32x256xf32>
    %68 = vector.shape_cast %67 : vector<1x32x256xf32> to vector<32x256xf32>
    %69 = vector.shape_cast %66 : vector<32x256xf32> to vector<1x32x256xf32>
    tpu.vector_store %arg10[%c1_40, %c0_41, %c0_42], %69 {strides = array<i32>} : memref<2x32x256xf32, #tpu.memory_space<vmem>>, vector<1x32x256xf32>,
    return
  }
  func.func @transform_0(%arg0: i32) -> (i32, i32, i32) {
    %c0_i32 = arith.constant 0 : i32
    %c0_i32_0 = arith.constant 0 : i32
    %c0_i32_1 = arith.constant 0 : i32
    return %arg0, %c0_i32, %c0_i32_0 : i32, i32, i32
  }
  func.func @transform_1(%arg0: i32) -> (i32, i32) {
    %c0_i32 = arith.constant 0 : i32
    %c0_i32_0 = arith.constant 0 : i32
    %c0_i32_1 = arith.constant 0 : i32
    return %c0_i32, %c0_i32_0 : i32, i32
  }
  func.func @transform_2(%arg0: i32) -> (i32, i32) {
    %c0_i32 = arith.constant 0 : i32
    %c0_i32_0 = arith.constant 0 : i32
    %c0_i32_1 = arith.constant 0 : i32
    return %c0_i32, %c0_i32_0 : i32, i32
  }
  func.func @transform_3(%arg0: i32) -> (i32, i32) {
    %c0_i32 = arith.constant 0 : i32
    %c0_i32_0 = arith.constant 0 : i32
    %c0_i32_1 = arith.constant 0 : i32
    return %c0_i32, %c0_i32_0 : i32, i32
  }
  func.func @transform_4(%arg0: i32) -> (i32, i32) {
    %c0_i32 = arith.constant 0 : i32
    %c0_i32_0 = arith.constant 0 : i32
    %c0_i32_1 = arith.constant 0 : i32
    return %c0_i32, %c0_i32_0 : i32, i32
  }
  func.func @transform_5(%arg0: i32) -> (i32, i32) {
    %c0_i32 = arith.constant 0 : i32
    %c0_i32_0 = arith.constant 0 : i32
    %c0_i32_1 = arith.constant 0 : i32
    return %c0_i32, %c0_i32_0 : i32, i32
  }
  func.func @transform_6(%arg0: i32) -> (i32, i32) {
    %c0_i32 = arith.constant 0 : i32
    %c0_i32_0 = arith.constant 0 : i32
    %c0_i32_1 = arith.constant 0 : i32
    return %c0_i32, %c0_i32_0 : i32, i32
  }
  func.func @transform_7(%arg0: i32) -> (i32, i32) {
    %c0_i32 = arith.constant 0 : i32
    %c0_i32_0 = arith.constant 0 : i32
    %c0_i32_1 = arith.constant 0 : i32
    return %c0_i32, %c0_i32_0 : i32, i32
  }
  func.func @transform_8(%arg0: i32) -> (i32, i32) {
    %c0_i32 = arith.constant 0 : i32
    %c0_i32_0 = arith.constant 0 : i32
    %c0_i32_1 = arith.constant 0 : i32
    return %c0_i32, %c0_i32_0 : i32, i32
  }
  func.func @transform_9(%arg0: i32) -> (i32, i32, i32) {
    %c0_i32 = arith.constant 0 : i32
    %c0_i32_0 = arith.constant 0 : i32
    %c0_i32_1 = arith.constant 0 : i32
    return %arg0, %c0_i32, %c0_i32_0 : i32, i32, i32
  }
}

</mosaic_0001>

<llo_original>
// kernel: tpu_custom_call.1
$region0: #{tpu_custom_call.1}
  #allocation0 [shape = 'u32[]', space=smem, size = 0x4, offset = 0x4, fixed_abs, tag = 'smem constant byte address 0x4 - core index']
  #allocation1 [shape = 'u32[144,128]{1,0:T(1,128)}', space=vmem, size = 0x12000, scoped, tag = 'internal scratch']
  %s0 = inlined_call_operand.vmem [shape: f32[2,32,256], index: 0, kind: input, shape index: {}]
  %s1 = inlined_call_operand.hbm [shape: f32[32,32], index: 1, kind: input, shape index: {}]
  %s2 = inlined_call_operand.vmem [shape: f32[32,1], index: 2, kind: input, shape index: {}]
  %s3 = inlined_call_operand.hbm [shape: f32[32,32], index: 3, kind: input, shape index: {}]
  %s4 = inlined_call_operand.vmem [shape: f32[32,1], index: 4, kind: input, shape index: {}]
  %s5 = inlined_call_operand.vmem [shape: f32[2,32], index: 5, kind: input, shape index: {}]
  %s6 = inlined_call_operand.vmem [shape: f32[2,1], index: 6, kind: input, shape index: {}]
  %s7 = inlined_call_operand.vmem [shape: f32[32,2], index: 7, kind: input, shape index: {}]
  %s8 = inlined_call_operand.vmem [shape: f32[32,1], index: 8, kind: input, shape index: {}]
  %s9 = inlined_call_operand.hbm [shape: f32[2,32,256], index: 9, kind: output, shape index: {}]
  %s10 = sld [smem:[#allocation0]]
  $region54: #{tpu_custom_call.1} parent=0
    _
  %s12 = ssub.s32 1, %s10
  %s13 = scalar_select 0, %s12, %s10
  $region1: #{tpu_custom_call.1} parent=0
    #allocation2 [shape = 'u8[16384]{0}', space=vmem, size = 0x4000, scoped, tag = 'input window, operand 1, single buffered']
    #allocation3 [shape = 's32[1]{0}', space=sflag, size = 0x4, scoped, tag = 'scoped memory for tpu_custom_call.1']
    #allocation4 [shape = 's32[1]{0}', space=sflag, size = 0x4, scoped, tag = 'scoped memory for tpu_custom_call.1']
    #allocation5 [shape = 'u8[16384]{0}', space=vmem, size = 0x4000, scoped, tag = 'input window, operand 3, single buffered']
    #allocation6 [shape = 's32[1]{0}', space=sflag, size = 0x4, scoped, tag = 'scoped memory for tpu_custom_call.1']
    #allocation7 [shape = 'u8[65536]{0}', space=vmem, size = 0x10000, scoped, tag = 'output window, operand 0, single buffered']
    %14 = vsyncpa [#allocation3], 0
    %15 = vsyncpa [#allocation6], 0
    %16 = vsyncpa [#allocation4], 0
    // Predicated region
    $region2: #{tpu_custom_call.1} parent=1 // pred_check
      _
    $region3: #{tpu_custom_call.1} parent=1 // pred_check_branch
      %18 = sbr.rel (0) target = $region5
    $region4: #{tpu_custom_call.1} parent=1 // pred_region
      _
    $region5: #{tpu_custom_call.1} parent=1 // pred_fallthru
      _
    // Predicated region
    $region6: #{tpu_custom_call.1} parent=1 // pred_check
      _
    $region7: #{tpu_custom_call.1} parent=1 // pred_check_branch
      %20 = sbr.rel (0) target = $region9
    $region8: #{tpu_custom_call.1} parent=1 // pred_region
      %s22 = ssub.s32 512, 512
      %23 = vsyncadd [#allocation3], %s22
      %s24 = sshll.u32 [#allocation2], 4
      %s25 = int_to_ptr.vmem [resolvable:$true] %s24
      %30 = dma.hbm_to_vmem [thread:$0]  %s1, 512, %s25, [#allocation3], 128, 128, 8
    $region9: #{tpu_custom_call.1} parent=1 // pred_fallthru
      _
    // Predicated region
    $region10: #{tpu_custom_call.1} parent=1 // pred_check
      _
    $region11: #{tpu_custom_call.1} parent=1 // pred_check_branch
      %32 = sbr.rel (0) target = $region13
    $region12: #{tpu_custom_call.1} parent=1 // pred_region
      _
    $region13: #{tpu_custom_call.1} parent=1 // pred_fallthru
      _
    // Predicated region
    $region14: #{tpu_custom_call.1} parent=1 // pred_check
      _
    $region15: #{tpu_custom_call.1} parent=1 // pred_check_branch
      %34 = sbr.rel (0) target = $region17
    $region16: #{tpu_custom_call.1} parent=1 // pred_region
      %s36 = ssub.s32 512, 512
      %37 = vsyncadd [#allocation6], %s36
      %s38 = sshll.u32 [#allocation5], 4
      %s39 = int_to_ptr.vmem [resolvable:$true] %s38
      %44 = dma.hbm_to_vmem [thread:$0]  %s3, 512, %s39, [#allocation6], 128, 128, 8
    $region17: #{tpu_custom_call.1} parent=1 // pred_fallthru
      _
    // Predicated region
    $region18: #{tpu_custom_call.1} parent=1 // pred_check
      _
    $region19: #{tpu_custom_call.1} parent=1 // pred_check_branch
      %46 = sbr.rel (0) target = $region21
    $region20: #{tpu_custom_call.1} parent=1 // pred_region
      _
    $region21: #{tpu_custom_call.1} parent=1 // pred_fallthru
      _
    // Predicated region
    $region22: #{tpu_custom_call.1} parent=1 // pred_check
      _
    $region23: #{tpu_custom_call.1} parent=1 // pred_check_branch
      %48 = sbr.rel (0) target = $region25
    $region24: #{tpu_custom_call.1} parent=1 // pred_region
      _
    $region25: #{tpu_custom_call.1} parent=1 // pred_fallthru
      _
    // Predicated region
    $region26: #{tpu_custom_call.1} parent=1 // pred_check
      _
    $region27: #{tpu_custom_call.1} parent=1 // pred_check_branch
      %50 = sbr.rel (0) target = $region29
    $region28: #{tpu_custom_call.1} parent=1 // pred_region
      _
    $region29: #{tpu_custom_call.1} parent=1 // pred_fallthru
      _
    // Predicated region
    $region30: #{tpu_custom_call.1} parent=1 // pred_check
      _
    $region31: #{tpu_custom_call.1} parent=1 // pred_check_branch
      %52 = sbr.rel (0) target = $region33
    $region32: #{tpu_custom_call.1} parent=1 // pred_region
      _
    $region33: #{tpu_custom_call.1} parent=1 // pred_fallthru
      _
    // Predicated region
    $region34: #{tpu_custom_call.1} parent=1 // pred_check
      _
    $region35: #{tpu_custom_call.1} parent=1 // pred_check_branch
      %54 = sbr.rel (0) target = $region37
    $region36: #{tpu_custom_call.1} parent=1 // pred_region
      _
    $region37: #{tpu_custom_call.1} parent=1 // pred_fallthru
      _
    // Predicated region
    $region38: #{tpu_custom_call.1} parent=1 // pred_check
      _
    $region39: #{tpu_custom_call.1} parent=1 // pred_check_branch
      %56 = sbr.rel (0) target = $region41
    $region40: #{tpu_custom_call.1} parent=1 // pred_region
      %57 = dma.done [#allocation3], 512
    $region41: #{tpu_custom_call.1} parent=1 // pred_fallthru
      _
    // Predicated region
    $region42: #{tpu_custom_call.1} parent=1 // pred_check
      _
    $region43: #{tpu_custom_call.1} parent=1 // pred_check_branch
      %59 = sbr.rel (0) target = $region45
    $region44: #{tpu_custom_call.1} parent=1 // pred_region
      %60 = dma.done [#allocation6], 512
    $region45: #{tpu_custom_call.1} parent=1 // pred_fallthru
      _
    %v61 = vld [vmem:[#allocation2] sm:$0xff]
    %v62 = vld [vmem:[#allocation2 + $0x8] sm:$0xff]
    %v63 = vld [vmem:[#allocation2 + $0x10] sm:$0xff]
    %v64 = vld [vmem:[#allocation2 + $0x18] sm:$0xff]
    %v65 = vld [vmem:[#allocation5] sm:$0xff]
    %v66 = vld [vmem:[#allocation5 + $0x8] sm:$0xff]
    %v67 = vld [vmem:[#allocation5 + $0x10] sm:$0xff]
    %v68 = vld [vmem:[#allocation5 + $0x18] sm:$0xff]
    %v69 = vld [vmem:[%s5] sm:$0x3]
    %v70 = vld [vmem:[%s7] sm:$0xff]
    %v71 = vld [vmem:[%s7 + $0x8] sm:$0xff]
    %v72 = vld [vmem:[%s7 + $0x10] sm:$0xff]
    %v73 = vld [vmem:[%s7 + $0x18] sm:$0xff]
    %v74 = vld [vmem:[%s6] sm:$0x3]
    %v75 = vld [vmem:[%s8] sm:$0xff]
    %v76 = vld [vmem:[%s8 + $0x8] sm:$0xff]
    %v77 = vld [vmem:[%s8 + $0x10] sm:$0xff]
    %v78 = vld [vmem:[%s8 + $0x18] sm:$0xff]
    %v79 = vld [vmem:[%s2] sm:$0xff]
    %v80 = vld [vmem:[%s2 + $0x8] sm:$0xff]
    %v81 = vld [vmem:[%s2 + $0x10] sm:$0xff]
    %v82 = vld [vmem:[%s2 + $0x18] sm:$0xff]
    %84 = vset.pattern.permute.xlu0 0
    %85 = vperm.xlu0 %84, %v79
    %v86 = vpop.permute.xlu0 %85
    %89 = vset.pattern.permute.xlu0 0
    %90 = vperm.xlu0 %89, %v80
    %v91 = vpop.permute.xlu0 %90
    %94 = vset.pattern.permute.xlu0 0
    %95 = vperm.xlu0 %94, %v81
    %v96 = vpop.permute.xlu0 %95
    %99 = vset.pattern.permute.xlu0 0
    %100 = vperm.xlu0 %99, %v82
    %v101 = vpop.permute.xlu0 %100
    %v103 = vld [vmem:[%s4] sm:$0xff]
    %v104 = vld [vmem:[%s4 + $0x8] sm:$0xff]
    %v105 = vld [vmem:[%s4 + $0x10] sm:$0xff]
    %v106 = vld [vmem:[%s4 + $0x18] sm:$0xff]
    %108 = vset.pattern.permute.xlu0 0
    %109 = vperm.xlu0 %108, %v103
    %v110 = vpop.permute.xlu0 %109
    %113 = vset.pattern.permute.xlu0 0
    %114 = vperm.xlu0 %113, %v104
    %v115 = vpop.permute.xlu0 %114
    %118 = vset.pattern.permute.xlu0 0
    %119 = vperm.xlu0 %118, %v105
    %v120 = vpop.permute.xlu0 %119
    %123 = vset.pattern.permute.xlu0 0
    %124 = vperm.xlu0 %123, %v106
    %v125 = vpop.permute.xlu0 %124
    %v127 = vld [vmem:[%s0] sm:$0xff]
    %v128 = vld [vmem:[%s0 + $0x8] sm:$0xff]
    %v129 = vld [vmem:[%s0 + $0x10] sm:$0xff]
    %v130 = vld [vmem:[%s0 + $0x18] sm:$0xff]
    %v131 = vld [vmem:[%s0 + $0x20] sm:$0xff]
    %v132 = vld [vmem:[%s0 + $0x28] sm:$0xff]
    %v133 = vld [vmem:[%s0 + $0x30] sm:$0xff]
    %v134 = vld [vmem:[%s0 + $0x38] sm:$0xff]
    %vm135 = vcmask 261120
    %v137 = vsel %vm135, %v61, 0
    %v140 = vsel %vm135, %v62, 0
    %v143 = vsel %vm135, %v63, 0
    %v146 = vsel %vm135, %v64, 0
    %148 = vmatprep.subr.mxu0 0.0
    %149 = vmatpush1.msra.mxu0 0.0
    %150 = vmatprep.subr.mxu0 0.0
    %151 = vmatpush1.msra.mxu0 0.0
    %152 = vmatprep.subr.mxu0 0.0
    %153 = vmatpush1.msra.mxu0 0.0
    %154 = vmatprep.subr.mxu0 0.0
    %155 = vmatpush1.msra.mxu0 0.0
    %156 = vmatprep.subr.mxu0 0.0
    %157 = vmatpush1.msra.mxu0 0.0
    %158 = vmatprep.subr.mxu0 0.0
    %159 = vmatpush1.msra.mxu0 0.0
    %160 = vmatprep.subr.mxu0 0.0
    %161 = vmatpush1.msra.mxu0 0.0
    %162 = vmatprep.subr.mxu0 0.0
    %163 = vmatpush1.msra.mxu0 0.0
    %164 = vmatprep.subr.mxu0 0.0
    %165 = vmatpush1.msra.mxu0 0.0
    %166 = vmatprep.subr.mxu0 0.0
    %167 = vmatpush1.msra.mxu0 0.0
    %168 = vmatprep.subr.mxu0 0.0
    %169 = vmatpush1.msra.mxu0 0.0
    %170 = vmatprep.subr.mxu0 0.0
    %171 = vmatpush1.msra.mxu0 0.0
    %172 = vmatprep.subr.mxu0 %v134
    %173 = vmatpush1.msra.mxu0 %v133
    %174 = vmatprep.subr.mxu0 %v132
    %175 = vmatpush1.msra.mxu0 %v131
    %176 = vmatprep.subr.mxu0 %v130
    %177 = vmatpush1.msra.mxu0 %v129
    %178 = vmatprep.subr.mxu0 %v128
    %179 = vmatpush1.msra.mxu0 %v127
    %180 = vmatprep.subr.mxu0 0.0
    %181 = vmatpush2.msra.mxu0 0.0
    %182 = vmatprep.subr.mxu0 0.0
    %183 = vmatpush2.msra.mxu0 0.0
    %184 = vmatprep.subr.mxu0 0.0
    %185 = vmatpush2.msra.mxu0 0.0
    %186 = vmatprep.subr.mxu0 0.0
    %187 = vmatpush2.msra.mxu0 0.0
    %188 = vmatprep.subr.mxu0 0.0
    %189 = vmatpush2.msra.mxu0 0.0
    %190 = vmatprep.subr.mxu0 0.0
    %191 = vmatpush2.msra.mxu0 0.0
    %192 = vmatprep.subr.mxu0 0.0
    %193 = vmatpush2.msra.mxu0 0.0
    %194 = vmatprep.subr.mxu0 0.0
    %195 = vmatpush2.msra.mxu0 0.0
    %196 = vmatprep.subr.mxu0 0.0
    %197 = vmatpush2.msra.mxu0 0.0
    %198 = vmatprep.subr.mxu0 0.0
    %199 = vmatpush2.msra.mxu0 0.0
    %200 = vmatprep.subr.mxu0 0.0
    %201 = vmatpush2.msra.mxu0 0.0
    %202 = vmatprep.subr.mxu0 0.0
    %203 = vmatpush2.msra.mxu0 0.0
    %204 = vmatprep.subr.mxu0 0.0
    %205 = vmatpush2.msra.mxu0 0.0
    %206 = vmatprep.subr.mxu0 0.0
    %207 = vmatpush2.msra.mxu0 0.0
    %208 = vmatprep.subr.mxu0 0.0
    %209 = vmatpush2.msra.mxu0 0.0
    %210 = vmatprep.subr.mxu0 0.0
    %211 = vmatpush2.msra.mxu0 0.0
    %212 = vmatprep.mubr.f32.mxu0 0.0
    %213 = vmatmul.mubr.f32.gmra.mxu0 %v137
    %v214 = vpop.f32.mrf.mxu0
    %v215 = vadd.f32 %v86, %v214
    %v216 = vpop.f32.mrf.mxu0
    %v217 = vadd.f32 %v86, %v216
    %218 = vmatprep.mubr.f32.mxu0 0.0
    %219 = vmatmul.mubr.f32.gmra.mxu0 %v140
    %v220 = vpop.f32.mrf.mxu0
    %v221 = vadd.f32 %v91, %v220
    %v222 = vpop.f32.mrf.mxu0
    %v223 = vadd.f32 %v91, %v222
    %224 = vmatprep.mubr.f32.mxu0 0.0
    %225 = vmatmul.mubr.f32.gmra.mxu0 %v143
    %v226 = vpop.f32.mrf.mxu0
    %v227 = vadd.f32 %v96, %v226
    %v228 = vpop.f32.mrf.mxu0
    %v229 = vadd.f32 %v96, %v228
    %230 = vmatprep.mubr.f32.mxu0 0.0
    %231 = vmatmul.mubr.f32.gmra.mxu0 %v146
    %v232 = vpop.f32.mrf.mxu0
    %v233 = vadd.f32 %v101, %v232
    %v234 = vpop.f32.mrf.mxu0
    %v235 = vadd.f32 %v101, %v234
    %236 = vdwg.mxu0
    %v237 = vmax.f32 %v215, 0.0
    %v238 = vmax.f32 %v217, 0.0
    %v239 = vmax.f32 %v221, 0.0
    %v240 = vmax.f32 %v223, 0.0
    %v241 = vmax.f32 %v227, 0.0
    %v242 = vmax.f32 %v229, 0.0
    %v243 = vmax.f32 %v233, 0.0
    %v244 = vmax.f32 %v235, 0.0
    %v246 = vsel %vm135, %v65, 0
    %v249 = vsel %vm135, %v66, 0
    %v252 = vsel %vm135, %v67, 0
    %v255 = vsel %vm135, %v68, 0
    %257 = vmatprep.subr.mxu0 0.0
    %258 = vmatpush1.msra.mxu0 0.0
    %259 = vmatprep.subr.mxu0 0.0
    %260 = vmatpush1.msra.mxu0 0.0
    %261 = vmatprep.subr.mxu0 0.0
    %262 = vmatpush1.msra.mxu0 0.0
    %263 = vmatprep.subr.mxu0 0.0
    %264 = vmatpush1.msra.mxu0 0.0
    %265 = vmatprep.subr.mxu0 0.0
    %266 = vmatpush1.msra.mxu0 0.0
    %267 = vmatprep.subr.mxu0 0.0
    %268 = vmatpush1.msra.mxu0 0.0
    %269 = vmatprep.subr.mxu0 0.0
    %270 = vmatpush1.msra.mxu0 0.0
    %271 = vmatprep.subr.mxu0 0.0
    %272 = vmatpush1.msra.mxu0 0.0
    %273 = vmatprep.subr.mxu0 0.0
    %274 = vmatpush1.msra.mxu0 0.0
    %275 = vmatprep.subr.mxu0 0.0
    %276 = vmatpush1.msra.mxu0 0.0
    %277 = vmatprep.subr.mxu0 0.0
    %278 = vmatpush1.msra.mxu0 0.0
    %279 = vmatprep.subr.mxu0 0.0
    %280 = vmatpush1.msra.mxu0 0.0
    %281 = vmatprep.subr.mxu0 %v244
    %282 = vmatpush1.msra.mxu0 %v243
    %283 = vmatprep.subr.mxu0 %v242
    %284 = vmatpush1.msra.mxu0 %v241
    %285 = vmatprep.subr.mxu0 %v240
    %286 = vmatpush1.msra.mxu0 %v239
    %287 = vmatprep.subr.mxu0 %v238
    %288 = vmatpush1.msra.mxu0 %v237
    %289 = vmatprep.subr.mxu0 0.0
    %290 = vmatpush2.msra.mxu0 0.0
    %291 = vmatprep.subr.mxu0 0.0
    %292 = vmatpush2.msra.mxu0 0.0
    %293 = vmatprep.subr.mxu0 0.0
    %294 = vmatpush2.msra.mxu0 0.0
    %295 = vmatprep.subr.mxu0 0.0
    %296 = vmatpush2.msra.mxu0 0.0
    %297 = vmatprep.subr.mxu0 0.0
    %298 = vmatpush2.msra.mxu0 0.0
    %299 = vmatprep.subr.mxu0 0.0
    %300 = vmatpush2.msra.mxu0 0.0
    %301 = vmatprep.subr.mxu0 0.0
    %302 = vmatpush2.msra.mxu0 0.0
    %303 = vmatprep.subr.mxu0 0.0
    %304 = vmatpush2.msra.mxu0 0.0
    %305 = vmatprep.subr.mxu0 0.0
    %306 = vmatpush2.msra.mxu0 0.0
    %307 = vmatprep.subr.mxu0 0.0
    %308 = vmatpush2.msra.mxu0 0.0
    %309 = vmatprep.subr.mxu0 0.0
    %310 = vmatpush2.msra.mxu0 0.0
    %311 = vmatprep.subr.mxu0 0.0
    %312 = vmatpush2.msra.mxu0 0.0
    %313 = vmatprep.subr.mxu0 0.0
    %314 = vmatpush2.msra.mxu0 0.0
    %315 = vmatprep.subr.mxu0 0.0
    %316 = vmatpush2.msra.mxu0 0.0
    %317 = vmatprep.subr.mxu0 0.0
    %318 = vmatpush2.msra.mxu0 0.0
    %319 = vmatprep.subr.mxu0 0.0
    %320 = vmatpush2.msra.mxu0 0.0
    %321 = vmatprep.mubr.f32.mxu0 0.0
    %322 = vmatmul.mubr.f32.gmra.mxu0 %v246
    %v323 = vpop.f32.mrf.mxu0
    %v324 = vadd.f32 %v110, %v323
    %v325 = vpop.f32.mrf.mxu0
    %v326 = vadd.f32 %v110, %v325
    %327 = vmatprep.mubr.f32.mxu0 0.0
    %328 = vmatmul.mubr.f32.gmra.mxu0 %v249
    %v329 = vpop.f32.mrf.mxu0
    %v330 = vadd.f32 %v115, %v329
    %v331 = vpop.f32.mrf.mxu0
    %v332 = vadd.f32 %v115, %v331
    %333 = vmatprep.mubr.f32.mxu0 0.0
    %334 = vmatmul.mubr.f32.gmra.mxu0 %v252
    %v335 = vpop.f32.mrf.mxu0
    %v336 = vadd.f32 %v120, %v335
    %v337 = vpop.f32.mrf.mxu0
    %v338 = vadd.f32 %v120, %v337
    %339 = vmatprep.mubr.f32.mxu0 0.0
    %340 = vmatmul.mubr.f32.gmra.mxu0 %v255
    %v341 = vpop.f32.mrf.mxu0
    %v342 = vadd.f32 %v125, %v341
    %v343 = vpop.f32.mrf.mxu0
    %v344 = vadd.f32 %v125, %v343
    %345 = vdwg.mxu0
    %v346 = vadd.f32 %v324, %v326
    %347 = vadd.xlane.f32.xlu0 %v346
    %v348 = vpop.xlane.xlu0 %347
    %v349 = vadd.f32 %v330, %v332
    %350 = vadd.xlane.f32.xlu0 %v349
    %v351 = vpop.xlane.xlu0 %350
    %v352 = vadd.f32 %v336, %v338
    %353 = vadd.xlane.f32.xlu0 %v352
    %v354 = vpop.xlane.xlu0 %353
    %v355 = vadd.f32 %v342, %v344
    %356 = vadd.xlane.f32.xlu0 %v355
    %v357 = vpop.xlane.xlu0 %356
    %v358 = vrcp.pop 256.0
    %v359 = vmul.f32 %v348, %v358
    %v360 = vmul.f32 %v351, %v358
    %v361 = vmul.f32 %v354, %v358
    %v362 = vmul.f32 %v357, %v358
    %v364 = vsel %vm135, %v69, 0
    %366 = vmatprep.subr.mxu0 0.0
    %367 = vmatpush1.msra.mxu0 0.0
    %368 = vmatprep.subr.mxu0 0.0
    %369 = vmatpush1.msra.mxu0 0.0
    %370 = vmatprep.subr.mxu0 0.0
    %371 = vmatpush1.msra.mxu0 0.0
    %372 = vmatprep.subr.mxu0 0.0
    %373 = vmatpush1.msra.mxu0 0.0
    %374 = vmatprep.subr.mxu0 0.0
    %375 = vmatpush1.msra.mxu0 0.0
    %376 = vmatprep.subr.mxu0 0.0
    %377 = vmatpush1.msra.mxu0 0.0
    %378 = vmatprep.subr.mxu0 0.0
    %379 = vmatpush1.msra.mxu0 0.0
    %380 = vmatprep.subr.mxu0 0.0
    %381 = vmatpush1.msra.mxu0 0.0
    %382 = vmatprep.subr.mxu0 0.0
    %383 = vmatpush1.msra.mxu0 0.0
    %384 = vmatprep.subr.mxu0 0.0
    %385 = vmatpush1.msra.mxu0 0.0
    %386 = vmatprep.subr.mxu0 0.0
    %387 = vmatpush1.msra.mxu0 0.0
    %388 = vmatprep.subr.mxu0 0.0
    %389 = vmatpush1.msra.mxu0 0.0
    %390 = vmatprep.subr.mxu0 0.0
    %391 = vmatpush1.msra.mxu0 %v362
    %392 = vmatprep.subr.mxu0 0.0
    %393 = vmatpush1.msra.mxu0 %v361
    %394 = vmatprep.subr.mxu0 0.0
    %395 = vmatpush1.msra.mxu0 %v360
    %396 = vmatprep.subr.mxu0 0.0
    %397 = vmatpush1.msra.mxu0 %v359
    %398 = vmatprep.subr.mxu0 0.0
    %399 = vmatpush2.msra.mxu0 0.0
    %400 = vmatprep.subr.mxu0 0.0
    %401 = vmatpush2.msra.mxu0 0.0
    %402 = vmatprep.subr.mxu0 0.0
    %403 = vmatpush2.msra.mxu0 0.0
    %404 = vmatprep.subr.mxu0 0.0
    %405 = vmatpush2.msra.mxu0 0.0
    %406 = vmatprep.subr.mxu0 0.0
    %407 = vmatpush2.msra.mxu0 0.0
    %408 = vmatprep.subr.mxu0 0.0
    %409 = vmatpush2.msra.mxu0 0.0
    %410 = vmatprep.subr.mxu0 0.0
    %411 = vmatpush2.msra.mxu0 0.0
    %412 = vmatprep.subr.mxu0 0.0
    %413 = vmatpush2.msra.mxu0 0.0
    %414 = vmatprep.subr.mxu0 0.0
    %415 = vmatpush2.msra.mxu0 0.0
    %416 = vmatprep.subr.mxu0 0.0
    %417 = vmatpush2.msra.mxu0 0.0
    %418 = vmatprep.subr.mxu0 0.0
    %419 = vmatpush2.msra.mxu0 0.0
    %420 = vmatprep.subr.mxu0 0.0
    %421 = vmatpush2.msra.mxu0 0.0
    %422 = vmatprep.subr.mxu0 0.0
    %423 = vmatpush2.msra.mxu0 0.0
    %424 = vmatprep.subr.mxu0 0.0
    %425 = vmatpush2.msra.mxu0 0.0
    %426 = vmatprep.subr.mxu0 0.0
    %427 = vmatpush2.msra.mxu0 0.0
    %428 = vmatprep.subr.mxu0 0.0
    %429 = vmatpush2.msra.mxu0 0.0
    %430 = vmatprep.mubr.f32.mxu0 0.0
    %431 = vmatmul.mubr.f32.gmra.mxu0 %v364
    %v432 = vpop.f32.mrf.mxu0
    %v433 = vadd.f32 %v74, %v432
    %v434 = vpop.f32.mrf.mxu0
    %435 = vdwg.mxu0
    %v436 = vmax.f32 %v433, 0.0
    %vm437 = vcmask 15360
    %v439 = vsel %vm437, %v70, 0
    %v442 = vsel %vm437, %v71, 0
    %v445 = vsel %vm437, %v72, 0
    %v448 = vsel %vm437, %v73, 0
    %vm450 = vcmask 1041408
    %v452 = vsel %vm450, %v436, 0
    %454 = vmatprep.subr.mxu0 0.0
    %455 = vmatpush1.msra.mxu0 0.0
    %456 = vmatprep.subr.mxu0 0.0
    %457 = vmatpush1.msra.mxu0 0.0
    %458 = vmatprep.subr.mxu0 0.0
    %459 = vmatpush1.msra.mxu0 0.0
    %460 = vmatprep.subr.mxu0 0.0
    %461 = vmatpush1.msra.mxu0 0.0
    %462 = vmatprep.subr.mxu0 0.0
    %463 = vmatpush1.msra.mxu0 0.0
    %464 = vmatprep.subr.mxu0 0.0
    %465 = vmatpush1.msra.mxu0 0.0
    %466 = vmatprep.subr.mxu0 0.0
    %467 = vmatpush1.msra.mxu0 0.0
    %468 = vmatprep.subr.mxu0 0.0
    %469 = vmatpush1.msra.mxu0 0.0
    %470 = vmatprep.subr.mxu0 0.0
    %471 = vmatpush1.msra.mxu0 0.0
    %472 = vmatprep.subr.mxu0 0.0
    %473 = vmatpush1.msra.mxu0 0.0
    %474 = vmatprep.subr.mxu0 0.0
    %475 = vmatpush1.msra.mxu0 0.0
    %476 = vmatprep.subr.mxu0 0.0
    %477 = vmatpush1.msra.mxu0 0.0
    %478 = vmatprep.subr.mxu0 0.0
    %479 = vmatpush1.msra.mxu0 0.0
    %480 = vmatprep.subr.mxu0 0.0
    %481 = vmatpush1.msra.mxu0 0.0
    %482 = vmatprep.subr.mxu0 0.0
    %483 = vmatpush1.msra.mxu0 0.0
    %484 = vmatprep.subr.mxu0 0.0
    %485 = vmatpush1.msra.mxu0 %v452
    %486 = vmatprep.subr.mxu0 0.0
    %487 = vmatpush2.msra.mxu0 0.0
    %488 = vmatprep.subr.mxu0 0.0
    %489 = vmatpush2.msra.mxu0 0.0
    %490 = vmatprep.subr.mxu0 0.0
    %491 = vmatpush2.msra.mxu0 0.0
    %492 = vmatprep.subr.mxu0 0.0
    %493 = vmatpush2.msra.mxu0 0.0
    %494 = vmatprep.subr.mxu0 0.0
    %495 = vmatpush2.msra.mxu0 0.0
    %496 = vmatprep.subr.mxu0 0.0
    %497 = vmatpush2.msra.mxu0 0.0
    %498 = vmatprep.subr.mxu0 0.0
    %499 = vmatpush2.msra.mxu0 0.0
    %500 = vmatprep.subr.mxu0 0.0
    %501 = vmatpush2.msra.mxu0 0.0
    %502 = vmatprep.subr.mxu0 0.0
    %503 = vmatpush2.msra.mxu0 0.0
    %504 = vmatprep.subr.mxu0 0.0
    %505 = vmatpush2.msra.mxu0 0.0
    %506 = vmatprep.subr.mxu0 0.0
    %507 = vmatpush2.msra.mxu0 0.0
    %508 = vmatprep.subr.mxu0 0.0
    %509 = vmatpush2.msra.mxu0 0.0
    %510 = vmatprep.subr.mxu0 0.0
    %511 = vmatpush2.msra.mxu0 0.0
    %512 = vmatprep.subr.mxu0 0.0
    %513 = vmatpush2.msra.mxu0 0.0
    %514 = vmatprep.subr.mxu0 0.0
    %515 = vmatpush2.msra.mxu0 0.0
    %516 = vmatprep.subr.mxu0 0.0
    %517 = vmatpush2.msra.mxu0 0.0
    %518 = vmatprep.mubr.f32.mxu0 0.0
    %519 = vmatmul.mubr.f32.gmra.mxu0 %v439
    %v520 = vpop.f32.mrf.mxu0
    %v521 = vadd.f32 %v75, %v520
    %v522 = vpop.f32.mrf.mxu0
    %523 = vmatprep.mubr.f32.mxu0 0.0
    %524 = vmatmul.mubr.f32.gmra.mxu0 %v442
    %v525 = vpop.f32.mrf.mxu0
    %v526 = vadd.f32 %v76, %v525
    %v527 = vpop.f32.mrf.mxu0
    %528 = vmatprep.mubr.f32.mxu0 0.0
    %529 = vmatmul.mubr.f32.gmra.mxu0 %v445
    %v530 = vpop.f32.mrf.mxu0
    %v531 = vadd.f32 %v77, %v530
    %v532 = vpop.f32.mrf.mxu0
    %533 = vmatprep.mubr.f32.mxu0 0.0
    %534 = vmatmul.mubr.f32.gmra.mxu0 %v448
    %v535 = vpop.f32.mrf.mxu0
    %v536 = vadd.f32 %v78, %v535
    %v537 = vpop.f32.mrf.mxu0
    %538 = vdwg.mxu0
    %v539 = vxor.u32 %v521, 2147483648
    %v540 = vxor.u32 %v526, 2147483648
    %v541 = vxor.u32 %v531, 2147483648
    %v542 = vxor.u32 %v536, 2147483648
    %v543 = vmul.f32 %v539, 1.442695
    %v544 = vpow.pop %v543
    %v545 = vmul.f32 %v540, 1.442695
    %v546 = vpow.pop %v545
    %v547 = vmul.f32 %v541, 1.442695
    %v548 = vpow.pop %v547
    %v549 = vmul.f32 %v542, 1.442695
    %v550 = vpow.pop %v549
    %v551 = vadd.f32 %v544, 1.0
    %v552 = vadd.f32 %v546, 1.0
    %v553 = vadd.f32 %v548, 1.0
    %v554 = vadd.f32 %v550, 1.0
    %v555 = vrcp.pop %v551
    %v556 = vmul.f32 1.0, %v555
    %v557 = vrcp.pop %v552
    %v558 = vmul.f32 1.0, %v557
    %v559 = vrcp.pop %v553
    %v560 = vmul.f32 1.0, %v559
    %v561 = vrcp.pop %v554
    %v562 = vmul.f32 1.0, %v561
    %564 = vset.pattern.permute.xlu0 0
    %565 = vperm.xlu0 %564, %v556
    %v566 = vpop.permute.xlu0 %565
    %569 = vset.pattern.permute.xlu0 0
    %570 = vperm.xlu0 %569, %v558
    %v571 = vpop.permute.xlu0 %570
    %574 = vset.pattern.permute.xlu0 0
    %575 = vperm.xlu0 %574, %v560
    %v576 = vpop.permute.xlu0 %575
    %579 = vset.pattern.permute.xlu0 0
    %580 = vperm.xlu0 %579, %v562
    %v581 = vpop.permute.xlu0 %580
    %v583 = vmul.f32 %v324, %v566
    %v584 = vmul.f32 %v326, %v566
    %v585 = vmul.f32 %v330, %v571
    %v586 = vmul.f32 %v332, %v571
    %v587 = vmul.f32 %v336, %v576
    %v588 = vmul.f32 %v338, %v576
    %v589 = vmul.f32 %v342, %v581
    %v590 = vmul.f32 %v344, %v581
    %v591 = vadd.f32 %v583, %v127
    %v592 = vadd.f32 %v584, %v128
    %v593 = vadd.f32 %v585, %v129
    %v594 = vadd.f32 %v586, %v130
    %v595 = vadd.f32 %v587, %v131
    %v596 = vadd.f32 %v588, %v132
    %v597 = vadd.f32 %v589, %v133
    %v598 = vadd.f32 %v590, %v134
    %599 = vst [vmem:[#allocation7] sm:$0xff] %v591
    %600 = vst [vmem:[#allocation7 + $0x8] sm:$0xff] %v592
    %601 = vst [vmem:[#allocation7 + $0x10] sm:$0xff] %v593
    %602 = vst [vmem:[#allocation7 + $0x18] sm:$0xff] %v594
    %603 = vst [vmem:[#allocation7 + $0x20] sm:$0xff] %v595
    %604 = vst [vmem:[#allocation7 + $0x28] sm:$0xff] %v596
    %605 = vst [vmem:[#allocation7 + $0x30] sm:$0xff] %v597
    %606 = vst [vmem:[#allocation7 + $0x38] sm:$0xff] %v598
    %s607 = scalar_lea.vmem %s0, 64
    %v608 = vld [vmem:[%s607] sm:$0xff]
    %v609 = vld [vmem:[%s607 + $0x8] sm:$0xff]
    %v610 = vld [vmem:[%s607 + $0x10] sm:$0xff]
    %v611 = vld [vmem:[%s607 + $0x18] sm:$0xff]
    %v612 = vld [vmem:[%s607 + $0x20] sm:$0xff]
    %v613 = vld [vmem:[%s607 + $0x28] sm:$0xff]
    %v614 = vld [vmem:[%s607 + $0x30] sm:$0xff]
    %v615 = vld [vmem:[%s607 + $0x38] sm:$0xff]
    %616 = vmatprep.subr.mxu0 0.0
    %617 = vmatpush1.msra.mxu0 0.0
    %618 = vmatprep.subr.mxu0 0.0
    %619 = vmatpush1.msra.mxu0 0.0
    %620 = vmatprep.subr.mxu0 0.0
    %621 = vmatpush1.msra.mxu0 0.0
    %622 = vmatprep.subr.mxu0 0.0
    %623 = vmatpush1.msra.mxu0 0.0
    %624 = vmatprep.subr.mxu0 0.0
    %625 = vmatpush1.msra.mxu0 0.0
    %626 = vmatprep.subr.mxu0 0.0
    %627 = vmatpush1.msra.mxu0 0.0
    %628 = vmatprep.subr.mxu0 0.0
    %629 = vmatpush1.msra.mxu0 0.0
    %630 = vmatprep.subr.mxu0 0.0
    %631 = vmatpush1.msra.mxu0 0.0
    %632 = vmatprep.subr.mxu0 0.0
    %633 = vmatpush1.msra.mxu0 0.0
    %634 = vmatprep.subr.mxu0 0.0
    %635 = vmatpush1.msra.mxu0 0.0
    %636 = vmatprep.subr.mxu0 0.0
    %637 = vmatpush1.msra.mxu0 0.0
    %638 = vmatprep.subr.mxu0 0.0
    %639 = vmatpush1.msra.mxu0 0.0
    %640 = vmatprep.subr.mxu0 %v615
    %641 = vmatpush1.msra.mxu0 %v614
    %642 = vmatprep.subr.mxu0 %v613
    %643 = vmatpush1.msra.mxu0 %v612
    %644 = vmatprep.subr.mxu0 %v611
    %645 = vmatpush1.msra.mxu0 %v610
    %646 = vmatprep.subr.mxu0 %v609
    %647 = vmatpush1.msra.mxu0 %v608
    %648 = vmatprep.subr.mxu0 0.0
    %649 = vmatpush2.msra.mxu0 0.0
    %650 = vmatprep.subr.mxu0 0.0
    %651 = vmatpush2.msra.mxu0 0.0
    %652 = vmatprep.subr.mxu0 0.0
    %653 = vmatpush2.msra.mxu0 0.0
    %654 = vmatprep.subr.mxu0 0.0
    %655 = vmatpush2.msra.mxu0 0.0
    %656 = vmatprep.subr.mxu0 0.0
    %657 = vmatpush2.msra.mxu0 0.0
    %658 = vmatprep.subr.mxu0 0.0
    %659 = vmatpush2.msra.mxu0 0.0
    %660 = vmatprep.subr.mxu0 0.0
    %661 = vmatpush2.msra.mxu0 0.0
    %662 = vmatprep.subr.mxu0 0.0
    %663 = vmatpush2.msra.mxu0 0.0
    %664 = vmatprep.subr.mxu0 0.0
    %665 = vmatpush2.msra.mxu0 0.0
    %666 = vmatprep.subr.mxu0 0.0
    %667 = vmatpush2.msra.mxu0 0.0
    %668 = vmatprep.subr.mxu0 0.0
    %669 = vmatpush2.msra.mxu0 0.0
    %670 = vmatprep.subr.mxu0 0.0
    %671 = vmatpush2.msra.mxu0 0.0
    %672 = vmatprep.subr.mxu0 0.0
    %673 = vmatpush2.msra.mxu0 0.0
    %674 = vmatprep.subr.mxu0 0.0
    %675 = vmatpush2.msra.mxu0 0.0
    %676 = vmatprep.subr.mxu0 0.0
    %677 = vmatpush2.msra.mxu0 0.0
    %678 = vmatprep.subr.mxu0 0.0
    %679 = vmatpush2.msra.mxu0 0.0
    %680 = vmatprep.mubr.f32.mxu0 0.0
    %681 = vmatmul.mubr.f32.gmra.mxu0 %v137
    %v682 = vpop.f32.mrf.mxu0
    %v683 = vadd.f32 %v86, %v682
    %v684 = vpop.f32.mrf.mxu0
    %v685 = vadd.f32 %v86, %v684
    %686 = vmatprep.mubr.f32.mxu0 0.0
    %687 = vmatmul.mubr.f32.gmra.mxu0 %v140
    %v688 = vpop.f32.mrf.mxu0
    %v689 = vadd.f32 %v91, %v688
    %v690 = vpop.f32.mrf.mxu0
    %v691 = vadd.f32 %v91, %v690
    %692 = vmatprep.mubr.f32.mxu0 0.0
    %693 = vmatmul.mubr.f32.gmra.mxu0 %v143
    %v694 = vpop.f32.mrf.mxu0
    %v695 = vadd.f32 %v96, %v694
    %v696 = vpop.f32.mrf.mxu0
    %v697 = vadd.f32 %v96, %v696
    %698 = vmatprep.mubr.f32.mxu0 0.0
    %699 = vmatmul.mubr.f32.gmra.mxu0 %v146
    %v700 = vpop.f32.mrf.mxu0
    %v701 = vadd.f32 %v101, %v700
    %v702 = vpop.f32.mrf.mxu0
    %v703 = vadd.f32 %v101, %v702
    %704 = vdwg.mxu0
    %v705 = vmax.f32 %v683, 0.0
    %v706 = vmax.f32 %v685, 0.0
    %v707 = vmax.f32 %v689, 0.0
    %v708 = vmax.f32 %v691, 0.0
    %v709 = vmax.f32 %v695, 0.0
    %v710 = vmax.f32 %v697, 0.0
    %v711 = vmax.f32 %v701, 0.0
    %v712 = vmax.f32 %v703, 0.0
    %713 = vmatprep.subr.mxu0 0.0
    %714 = vmatpush1.msra.mxu0 0.0
    %715 = vmatprep.subr.mxu0 0.0
    %716 = vmatpush1.msra.mxu0 0.0
    %717 = vmatprep.subr.mxu0 0.0
    %718 = vmatpush1.msra.mxu0 0.0
    %719 = vmatprep.subr.mxu0 0.0
    %720 = vmatpush1.msra.mxu0 0.0
    %721 = vmatprep.subr.mxu0 0.0
    %722 = vmatpush1.msra.mxu0 0.0
    %723 = vmatprep.subr.mxu0 0.0
    %724 = vmatpush1.msra.mxu0 0.0
    %725 = vmatprep.subr.mxu0 0.0
    %726 = vmatpush1.msra.mxu0 0.0
    %727 = vmatprep.subr.mxu0 0.0
    %728 = vmatpush1.msra.mxu0 0.0
    %729 = vmatprep.subr.mxu0 0.0
    %730 = vmatpush1.msra.mxu0 0.0
    %731 = vmatprep.subr.mxu0 0.0
    %732 = vmatpush1.msra.mxu0 0.0
    %733 = vmatprep.subr.mxu0 0.0
    %734 = vmatpush1.msra.mxu0 0.0
    %735 = vmatprep.subr.mxu0 0.0
    %736 = vmatpush1.msra.mxu0 0.0
    %737 = vmatprep.subr.mxu0 %v712
    %738 = vmatpush1.msra.mxu0 %v711
    %739 = vmatprep.subr.mxu0 %v710
    %740 = vmatpush1.msra.mxu0 %v709
    %741 = vmatprep.subr.mxu0 %v708
    %742 = vmatpush1.msra.mxu0 %v707
    %743 = vmatprep.subr.mxu0 %v706
    %744 = vmatpush1.msra.mxu0 %v705
    %745 = vmatprep.subr.mxu0 0.0
    %746 = vmatpush2.msra.mxu0 0.0
    %747 = vmatprep.subr.mxu0 0.0
    %748 = vmatpush2.msra.mxu0 0.0
    %749 = vmatprep.subr.mxu0 0.0
    %750 = vmatpush2.msra.mxu0 0.0
    %751 = vmatprep.subr.mxu0 0.0
    %752 = vmatpush2.msra.mxu0 0.0
    %753 = vmatprep.subr.mxu0 0.0
    %754 = vmatpush2.msra.mxu0 0.0
    %755 = vmatprep.subr.mxu0 0.0
    %756 = vmatpush2.msra.mxu0 0.0
    %757 = vmatprep.subr.mxu0 0.0
    %758 = vmatpush2.msra.mxu0 0.0
    %759 = vmatprep.subr.mxu0 0.0
    %760 = vmatpush2.msra.mxu0 0.0
    %761 = vmatprep.subr.mxu0 0.0
    %762 = vmatpush2.msra.mxu0 0.0
    %763 = vmatprep.subr.mxu0 0.0
    %764 = vmatpush2.msra.mxu0 0.0
    %765 = vmatprep.subr.mxu0 0.0
    %766 = vmatpush2.msra.mxu0 0.0
    %767 = vmatprep.subr.mxu0 0.0
    %768 = vmatpush2.msra.mxu0 0.0
    %769 = vmatprep.subr.mxu0 0.0
    %770 = vmatpush2.msra.mxu0 0.0
    %771 = vmatprep.subr.mxu0 0.0
    %772 = vmatpush2.msra.mxu0 0.0
    %773 = vmatprep.subr.mxu0 0.0
    %774 = vmatpush2.msra.mxu0 0.0
    %775 = vmatprep.subr.mxu0 0.0
    %776 = vmatpush2.msra.mxu0 0.0
    %777 = vmatprep.mubr.f32.mxu0 0.0
    %778 = vmatmul.mubr.f32.gmra.mxu0 %v246
    %v779 = vpop.f32.mrf.mxu0
    %v780 = vadd.f32 %v110, %v779
    %v781 = vpop.f32.mrf.mxu0
    %v782 = vadd.f32 %v110, %v781
    %783 = vmatprep.mubr.f32.mxu0 0.0
    %784 = vmatmul.mubr.f32.gmra.mxu0 %v249
    %v785 = vpop.f32.mrf.mxu0
    %v786 = vadd.f32 %v115, %v785
    %v787 = vpop.f32.mrf.mxu0
    %v788 = vadd.f32 %v115, %v787
    %789 = vmatprep.mubr.f32.mxu0 0.0
    %790 = vmatmul.mubr.f32.gmra.mxu0 %v252
    %v791 = vpop.f32.mrf.mxu0
    %v792 = vadd.f32 %v120, %v791
    %v793 = vpop.f32.mrf.mxu0
    %v794 = vadd.f32 %v120, %v793
    %795 = vmatprep.mubr.f32.mxu0 0.0
    %796 = vmatmul.mubr.f32.gmra.mxu0 %v255
    %v797 = vpop.f32.mrf.mxu0
    %v798 = vadd.f32 %v125, %v797
    %v799 = vpop.f32.mrf.mxu0
    %v800 = vadd.f32 %v125, %v799
    %801 = vdwg.mxu0
    %v802 = vadd.f32 %v780, %v782
    %803 = vadd.xlane.f32.xlu0 %v802
    %v804 = vpop.xlane.xlu0 %803
    %v805 = vadd.f32 %v786, %v788
    %806 = vadd.xlane.f32.xlu0 %v805
    %v807 = vpop.xlane.xlu0 %806
    %v808 = vadd.f32 %v792, %v794
    %809 = vadd.xlane.f32.xlu0 %v808
    %v810 = vpop.xlane.xlu0 %809
    %v811 = vadd.f32 %v798, %v800
    %812 = vadd.xlane.f32.xlu0 %v811
    %v813 = vpop.xlane.xlu0 %812
    %v814 = vmul.f32 %v804, %v358
    %v815 = vmul.f32 %v807, %v358
    %v816 = vmul.f32 %v810, %v358
    %v817 = vmul.f32 %v813, %v358
    %818 = vmatprep.subr.mxu0 0.0
    %819 = vmatpush1.msra.mxu0 0.0
    %820 = vmatprep.subr.mxu0 0.0
    %821 = vmatpush1.msra.mxu0 0.0
    %822 = vmatprep.subr.mxu0 0.0
    %823 = vmatpush1.msra.mxu0 0.0
    %824 = vmatprep.subr.mxu0 0.0
    %825 = vmatpush1.msra.mxu0 0.0
    %826 = vmatprep.subr.mxu0 0.0
    %827 = vmatpush1.msra.mxu0 0.0
    %828 = vmatprep.subr.mxu0 0.0
    %829 = vmatpush1.msra.mxu0 0.0
    %830 = vmatprep.subr.mxu0 0.0
    %831 = vmatpush1.msra.mxu0 0.0
    %832 = vmatprep.subr.mxu0 0.0
    %833 = vmatpush1.msra.mxu0 0.0
    %834 = vmatprep.subr.mxu0 0.0
    %835 = vmatpush1.msra.mxu0 0.0
    %836 = vmatprep.subr.mxu0 0.0
    %837 = vmatpush1.msra.mxu0 0.0
    %838 = vmatprep.subr.mxu0 0.0
    %839 = vmatpush1.msra.mxu0 0.0
    %840 = vmatprep.subr.mxu0 0.0
    %841 = vmatpush1.msra.mxu0 0.0
    %842 = vmatprep.subr.mxu0 0.0
    %843 = vmatpush1.msra.mxu0 %v817
    %844 = vmatprep.subr.mxu0 0.0
    %845 = vmatpush1.msra.mxu0 %v816
    %846 = vmatprep.subr.mxu0 0.0
    %847 = vmatpush1.msra.mxu0 %v815
    %848 = vmatprep.subr.mxu0 0.0
    %849 = vmatpush1.msra.mxu0 %v814
    %850 = vmatprep.subr.mxu0 0.0
    %851 = vmatpush2.msra.mxu0 0.0
    %852 = vmatprep.subr.mxu0 0.0
    %853 = vmatpush2.msra.mxu0 0.0
    %854 = vmatprep.subr.mxu0 0.0
    %855 = vmatpush2.msra.mxu0 0.0
    %856 = vmatprep.subr.mxu0 0.0
    %857 = vmatpush2.msra.mxu0 0.0
    %858 = vmatprep.subr.mxu0 0.0
    %859 = vmatpush2.msra.mxu0 0.0
    %860 = vmatprep.subr.mxu0 0.0
    %861 = vmatpush2.msra.mxu0 0.0
    %862 = vmatprep.subr.mxu0 0.0
    %863 = vmatpush2.msra.mxu0 0.0
    %864 = vmatprep.subr.mxu0 0.0
    %865 = vmatpush2.msra.mxu0 0.0
    %866 = vmatprep.subr.mxu0 0.0
    %867 = vmatpush2.msra.mxu0 0.0
    %868 = vmatprep.subr.mxu0 0.0
    %869 = vmatpush2.msra.mxu0 0.0
    %870 = vmatprep.subr.mxu0 0.0
    %871 = vmatpush2.msra.mxu0 0.0
    %872 = vmatprep.subr.mxu0 0.0
    %873 = vmatpush2.msra.mxu0 0.0
    %874 = vmatprep.subr.mxu0 0.0
    %875 = vmatpush2.msra.mxu0 0.0
    %876 = vmatprep.subr.mxu0 0.0
    %877 = vmatpush2.msra.mxu0 0.0
    %878 = vmatprep.subr.mxu0 0.0
    %879 = vmatpush2.msra.mxu0 0.0
    %880 = vmatprep.subr.mxu0 0.0
    %881 = vmatpush2.msra.mxu0 0.0
    %882 = vmatprep.mubr.f32.mxu0 0.0
    %883 = vmatmul.mubr.f32.gmra.mxu0 %v364
    %v884 = vpop.f32.mrf.mxu0
    %v885 = vadd.f32 %v74, %v884
    %v886 = vpop.f32.mrf.mxu0
    %887 = vdwg.mxu0
    %v888 = vmax.f32 %v885, 0.0
    %v890 = vsel %vm450, %v888, 0
    %892 = vmatprep.subr.mxu0 0.0
    %893 = vmatpush1.msra.mxu0 0.0
    %894 = vmatprep.subr.mxu0 0.0
    %895 = vmatpush1.msra.mxu0 0.0
    %896 = vmatprep.subr.mxu0 0.0
    %897 = vmatpush1.msra.mxu0 0.0
    %898 = vmatprep.subr.mxu0 0.0
    %899 = vmatpush1.msra.mxu0 0.0
    %900 = vmatprep.subr.mxu0 0.0
    %901 = vmatpush1.msra.mxu0 0.0
    %902 = vmatprep.subr.mxu0 0.0
    %903 = vmatpush1.msra.mxu0 0.0
    %904 = vmatprep.subr.mxu0 0.0
    %905 = vmatpush1.msra.mxu0 0.0
    %906 = vmatprep.subr.mxu0 0.0
    %907 = vmatpush1.msra.mxu0 0.0
    %908 = vmatprep.subr.mxu0 0.0
    %909 = vmatpush1.msra.mxu0 0.0
    %910 = vmatprep.subr.mxu0 0.0
    %911 = vmatpush1.msra.mxu0 0.0
    %912 = vmatprep.subr.mxu0 0.0
    %913 = vmatpush1.msra.mxu0 0.0
    %914 = vmatprep.subr.mxu0 0.0
    %915 = vmatpush1.msra.mxu0 0.0
    %916 = vmatprep.subr.mxu0 0.0
    %917 = vmatpush1.msra.mxu0 0.0
    %918 = vmatprep.subr.mxu0 0.0
    %919 = vmatpush1.msra.mxu0 0.0
    %920 = vmatprep.subr.mxu0 0.0
    %921 = vmatpush1.msra.mxu0 0.0
    %922 = vmatprep.subr.mxu0 0.0
    %923 = vmatpush1.msra.mxu0 %v890
    %924 = vmatprep.subr.mxu0 0.0
    %925 = vmatpush2.msra.mxu0 0.0
    %926 = vmatprep.subr.mxu0 0.0
    %927 = vmatpush2.msra.mxu0 0.0
    %928 = vmatprep.subr.mxu0 0.0
    %929 = vmatpush2.msra.mxu0 0.0
    %930 = vmatprep.subr.mxu0 0.0
    %931 = vmatpush2.msra.mxu0 0.0
    %932 = vmatprep.subr.mxu0 0.0
    %933 = vmatpush2.msra.mxu0 0.0
    %934 = vmatprep.subr.mxu0 0.0
    %935 = vmatpush2.msra.mxu0 0.0
    %936 = vmatprep.subr.mxu0 0.0
    %937 = vmatpush2.msra.mxu0 0.0
    %938 = vmatprep.subr.mxu0 0.0
    %939 = vmatpush2.msra.mxu0 0.0
    %940 = vmatprep.subr.mxu0 0.0
    %941 = vmatpush2.msra.mxu0 0.0
    %942 = vmatprep.subr.mxu0 0.0
    %943 = vmatpush2.msra.mxu0 0.0
    %944 = vmatprep.subr.mxu0 0.0
    %945 = vmatpush2.msra.mxu0 0.0
    %946 = vmatprep.subr.mxu0 0.0
    %947 = vmatpush2.msra.mxu0 0.0
    %948 = vmatprep.subr.mxu0 0.0
    %949 = vmatpush2.msra.mxu0 0.0
    %950 = vmatprep.subr.mxu0 0.0
    %951 = vmatpush2.msra.mxu0 0.0
    %952 = vmatprep.subr.mxu0 0.0
    %953 = vmatpush2.msra.mxu0 0.0
    %954 = vmatprep.subr.mxu0 0.0
    %955 = vmatpush2.msra.mxu0 0.0
    %956 = vmatprep.mubr.f32.mxu0 0.0
    %957 = vmatmul.mubr.f32.gmra.mxu0 %v439
    %v958 = vpop.f32.mrf.mxu0
    %v959 = vadd.f32 %v75, %v958
    %v960 = vpop.f32.mrf.mxu0
    %961 = vmatprep.mubr.f32.mxu0 0.0
    %962 = vmatmul.mubr.f32.gmra.mxu0 %v442
    %v963 = vpop.f32.mrf.mxu0
    %v964 = vadd.f32 %v76, %v963
    %v965 = vpop.f32.mrf.mxu0
    %966 = vmatprep.mubr.f32.mxu0 0.0
    %967 = vmatmul.mubr.f32.gmra.mxu0 %v445
    %v968 = vpop.f32.mrf.mxu0
    %v969 = vadd.f32 %v77, %v968
    %v970 = vpop.f32.mrf.mxu0
    %971 = vmatprep.mubr.f32.mxu0 0.0
    %972 = vmatmul.mubr.f32.gmra.mxu0 %v448
    %v973 = vpop.f32.mrf.mxu0
    %v974 = vadd.f32 %v78, %v973
    %v975 = vpop.f32.mrf.mxu0
    %976 = vdwg.mxu0
    %v977 = vxor.u32 %v959, 2147483648
    %v978 = vxor.u32 %v964, 2147483648
    %v979 = vxor.u32 %v969, 2147483648
    %v980 = vxor.u32 %v974, 2147483648
    %v981 = vmul.f32 %v977, 1.442695
    %v982 = vpow.pop %v981
    %v983 = vmul.f32 %v978, 1.442695
    %v984 = vpow.pop %v983
    %v985 = vmul.f32 %v979, 1.442695
    %v986 = vpow.pop %v985
    %v987 = vmul.f32 %v980, 1.442695
    %v988 = vpow.pop %v987
    %v989 = vadd.f32 %v982, 1.0
    %v990 = vadd.f32 %v984, 1.0
    %v991 = vadd.f32 %v986, 1.0
    %v992 = vadd.f32 %v988, 1.0
    %v993 = vrcp.pop %v989
    %v994 = vmul.f32 1.0, %v993
    %v995 = vrcp.pop %v990
    %v996 = vmul.f32 1.0, %v995
    %v997 = vrcp.pop %v991
    %v998 = vmul.f32 1.0, %v997
    %v999 = vrcp.pop %v992
    %v1000 = vmul.f32 1.0, %v999
    %1002 = vset.pattern.permute.xlu0 0
    %1003 = vperm.xlu0 %1002, %v994
    %v1004 = vpop.permute.xlu0 %1003
    %1007 = vset.pattern.permute.xlu0 0
    %1008 = vperm.xlu0 %1007, %v996
    %v1009 = vpop.permute.xlu0 %1008
    %1012 = vset.pattern.permute.xlu0 0
    %1013 = vperm.xlu0 %1012, %v998
    %v1014 = vpop.permute.xlu0 %1013
    %1017 = vset.pattern.permute.xlu0 0
    %1018 = vperm.xlu0 %1017, %v1000
    %v1019 = vpop.permute.xlu0 %1018
    %v1021 = vmul.f32 %v780, %v1004
    %v1022 = vmul.f32 %v782, %v1004
    %v1023 = vmul.f32 %v786, %v1009
    %v1024 = vmul.f32 %v788, %v1009
    %v1025 = vmul.f32 %v792, %v1014
    %v1026 = vmul.f32 %v794, %v1014
    %v1027 = vmul.f32 %v798, %v1019
    %v1028 = vmul.f32 %v800, %v1019
    %v1029 = vadd.f32 %v1021, %v608
    %v1030 = vadd.f32 %v1022, %v609
    %v1031 = vadd.f32 %v1023, %v610
    %v1032 = vadd.f32 %v1024, %v611
    %v1033 = vadd.f32 %v1025, %v612
    %v1034 = vadd.f32 %v1026, %v613
    %v1035 = vadd.f32 %v1027, %v614
    %v1036 = vadd.f32 %v1028, %v615
    %s1037 = scalar_lea.vmem [#allocation7], 64
    %1038 = vst [vmem:[%s1037] sm:$0xff] %v1029
    %1039 = vst [vmem:[%s1037 + $0x8] sm:$0xff] %v1030
    %1040 = vst [vmem:[%s1037 + $0x10] sm:$0xff] %v1031
    %1041 = vst [vmem:[%s1037 + $0x18] sm:$0xff] %v1032
    %1042 = vst [vmem:[%s1037 + $0x20] sm:$0xff] %v1033
    %1043 = vst [vmem:[%s1037 + $0x28] sm:$0xff] %v1034
    %1044 = vst [vmem:[%s1037 + $0x30] sm:$0xff] %v1035
    %1045 = vst [vmem:[%s1037 + $0x38] sm:$0xff] %v1036
    // Predicated region
    $region46: #{tpu_custom_call.1} parent=1 // pred_check
      _
    $region47: #{tpu_custom_call.1} parent=1 // pred_check_branch
      %1047 = sbr.rel (0) target = $region49
    $region48: #{tpu_custom_call.1} parent=1 // pred_region
      %s1049 = ssub.s32 2048, 2048
      %1050 = vsyncadd [#allocation4], %s1049
      %s1051 = sshll.u32 [#allocation7], 4
      %s1052 = int_to_ptr.vmem [resolvable:$true] %s1051
      %1057 = dma.vmem_to_hbm [thread:$0]  %s1052, 2048, %s9, [#allocation4], 256, 256, 16
    $region49: #{tpu_custom_call.1} parent=1 // pred_fallthru
      _
    // Predicated region
    $region50: #{tpu_custom_call.1} parent=1 // pred_check
      _
    $region51: #{tpu_custom_call.1} parent=1 // pred_check_branch
      %1059 = sbr.rel (0) target = $region53
    $region52: #{tpu_custom_call.1} parent=1 // pred_region
      %1060 = dma.done [#allocation4], 2048
    $region53: #{tpu_custom_call.1} parent=1 // pred_fallthru
      _
    %1061 = vsyncpa [#allocation3], 1
    %1062 = vsyncpa [#allocation6], 1
    %1063 = vsyncpa [#allocation4], 1

</llo_original>
